<compile_context>
chip_gen: v7x
topology: tpu7x:2x2x1
jax: 0.10.0
libtpu: 0.0.40
codegen_flags: <defaults>
</compile_context>

<pallas_src>
import jax
import jax.numpy as jnp
from jax.experimental import pallas as pl
from jax.experimental.pallas import tpu as pltpu


def _mlp_kernel(xt_ref, w1_ref, b1_ref, w2_ref, b2_ref, o_ref):
    # xt_ref : (D, TB)  batch tile along the lane axis (lane-dense)
    # w1_ref : (H, D)   resident weights (PyTorch linear1.weight layout)
    # b1_ref : (H, 1)   column bias, broadcast over lanes
    # w2_ref : (H, 1)   linear2.weight as a column, broadcast over lanes
    # b2_ref : (1,)     scalar bias in SMEM
    # o_ref  : (1, TB)  lane-dense output slab
    h = jnp.dot(w1_ref[...], xt_ref[...],
                preferred_element_type=jnp.float32)        # (H, TB) on MXU
    h = jnp.maximum(h + b1_ref[...], 0.0)                  # bias + ReLU (VPU)
    # Second layer (out_features == 1): VPU multiply + sublane reduce instead
    # of a lane-width-1 MXU matmul.
    o = jnp.sum(h * w2_ref[...], axis=0, keepdims=True) + b2_ref[0]  # (1, TB)
    o_ref[...] = jax.nn.sigmoid(o).astype(o_ref.dtype)     # EUP sigmoid


def _round_up(a, m):
    return ((a + m - 1) // m) * m


def neralnet2_forward(x, w1, b1, w2, b2, *, max_batch_tile=512):
    """Fused forward pass of NeralNet2.

    x : (B, D) float32
    w1: (H, D)   b1: (H,)    -- linear1 params, PyTorch layout
    w2: (1, H)   b2: (1,)    -- linear2 params, PyTorch layout
    returns: (B, 1) float32
    """
    B, D = x.shape
    H = w1.shape[0]

    # Batch tile on the lane axis: multiple of 128, capped so the
    # double-buffered (D, TB) f32 tiles stay tiny even on v7x (64 MiB VMEM).
    TB = min(max_batch_tile, _round_up(B, 128))
    B_pad = _round_up(B, TB)
    grid = (B_pad // TB,)

    # Layout plumbing in the wrapper (not compute): pad + transpose x so the
    # batch is lane-dense inside the kernel and the output is a (1, TB) slab.
    xt = jnp.pad(x.astype(jnp.float32), ((0, B_pad - B), (0, 0))).T  # (D, B_pad)
    w1f = w1.astype(jnp.float32)                                     # (H, D)
    b1c = b1.astype(jnp.float32).reshape(H, 1)                       # (H, 1)
    w2c = w2.astype(jnp.float32).reshape(H, 1)                       # (H, 1)
    b2s = b2.astype(jnp.float32).reshape(1)                          # (1,)

    out = pl.pallas_call(
        _mlp_kernel,
        out_shape=jax.ShapeDtypeStruct((1, B_pad), jnp.float32),
        grid=grid,
        in_specs=[
            pl.BlockSpec((D, TB), lambda i: (0, i)),            # x^T, streamed
            pl.BlockSpec((H, D), lambda i: (0, 0)),             # w1, resident
            pl.BlockSpec((H, 1), lambda i: (0, 0)),             # b1
            pl.BlockSpec((H, 1), lambda i: (0, 0)),             # w2
            pl.BlockSpec(memory_space=pltpu.MemorySpace.SMEM),  # b2 scalar
        ],
        out_specs=pl.BlockSpec((1, TB), lambda i: (0, i)),
        compiler_params=pltpu.CompilerParams(
            dimension_semantics=("parallel",)),   # shards across TCs on v7x
    )(xt, w1f, b1c, w2c, b2s)

    return out[0, :B].reshape(B, 1)


def _reference(x, w1, b1, w2, b2):
    h = jnp.maximum(x @ w1.T + b1, 0.0)
    return jax.nn.sigmoid(h @ w2.T + b2)


if __name__ == "__main__":
    key = jax.random.PRNGKey(0)
    k_x, k_w1, k_b1, k_w2, k_b2 = jax.random.split(key, 5)

    batch = 8
    input_size = 16
    hidden_size = 32

    # Deterministic synthetic parameters (PyTorch-like uniform init scale),
    # stored in PyTorch nn.Linear layout.
    bound1 = 1.0 / (input_size ** 0.5)
    bound2 = 1.0 / (hidden_size ** 0.5)
    x = jax.random.normal(k_x, (batch, input_size), dtype=jnp.float32)
    w1 = jax.random.uniform(k_w1, (hidden_size, input_size), jnp.float32,
                            -bound1, bound1)
    b1 = jax.random.uniform(k_b1, (hidden_size,), jnp.float32,
                            -bound1, bound1)
    w2 = jax.random.uniform(k_w2, (1, hidden_size), jnp.float32,
                            -bound2, bound2)
    b2 = jax.random.uniform(k_b2, (1,), jnp.float32, -bound2, bound2)

    y = neralnet2_forward(x, w1, b1, w2, b2)
    jax.block_until_ready(y)

    y_ref = _reference(x, w1, b1, w2, b2)
    assert y.shape == (batch, 1)
    assert jnp.allclose(y, y_ref, atol=1e-5, rtol=1e-5), \
        float(jnp.max(jnp.abs(y - y_ref)))

    print("KERNEL_OK")
</pallas_src>

<mosaic_0001>
module attributes {stable_mosaic.version = 11 : i64} {
  func.func @_mlp_kernel(%arg0: i32, %arg1: memref<16x128xf32, #tpu.memory_space<vmem>>, %arg2: memref<32x16xf32, #tpu.memory_space<vmem>>, %arg3: memref<32x1xf32, #tpu.memory_space<vmem>>, %arg4: memref<32x1xf32, #tpu.memory_space<vmem>>, %arg5: memref<1xf32, #tpu.memory_space<smem>>, %arg6: memref<1x128xf32, #tpu.memory_space<vmem>>) attributes {dimension_semantics = [#tpu.dimension_semantics<parallel>], iteration_bounds = array<i64: 1>, scalar_prefetch = 0 : i64, scratch_operands = 0 : i64, tpu.core_type = #tpu.core_type<tc>, window_params = [{transform_indices = @transform_0, window_bounds = array<i64: 16, 128>}, {pipeline_mode = #tpu.pipeline_mode<synchronous>, transform_indices = @transform_1, window_bounds = array<i64: 32, 16>}, {pipeline_mode = #tpu.pipeline_mode<synchronous>, transform_indices = @transform_2, window_bounds = array<i64: 32, 1>}, {pipeline_mode = #tpu.pipeline_mode<synchronous>, transform_indices = @transform_3, window_bounds = array<i64: 32, 1>}, {transform_indices = @transform_4, window_bounds = array<i64: 1>}, {transform_indices = @transform_5, window_bounds = array<i64: 1, 128>}]} {
    %c0 = arith.constant 0 : index
    %c0_0 = arith.constant 0 : index
    %0 = vector.load %arg2[%c0, %c0_0] : memref<32x16xf32, #tpu.memory_space<vmem>>, vector<32x16xf32>
    %c0_1 = arith.constant 0 : index
    %c0_2 = arith.constant 0 : index
    %1 = vector.load %arg1[%c0_1, %c0_2] : memref<16x128xf32, #tpu.memory_space<vmem>>, vector<16x128xf32>
    %cst = arith.constant dense<0.000000e+00> : vector<32x128xf32>
    %2 = tpu.matmul %0, %1, %cst {dimension_numbers = #tpu.dot_dimension_numbers<[1], [0], [0], [1], [0, 0, 1, 1], [], []>} : vector<32x16xf32>, vector<16x128xf32>, vector<32x128xf32> -> vector<32x128xf32>
    %c0_3 = arith.constant 0 : index
    %c0_4 = arith.constant 0 : index
    %3 = vector.load %arg3[%c0_3, %c0_4] : memref<32x1xf32, #tpu.memory_space<vmem>>, vector<32x1xf32>
    %4 = vector.broadcast %3 : vector<32x1xf32> to vector<32x128xf32>
    %5 = arith.addf %2, %4 : vector<32x128xf32>
    %cst_5 = arith.constant 0.000000e+00 : f32
    %6 = vector.broadcast %cst_5 : f32 to vector<32x128xf32>
    %7 = arith.maximumf %5, %6 : vector<32x128xf32>
    %c0_6 = arith.constant 0 : index
    %c0_7 = arith.constant 0 : index
    %8 = vector.load %arg4[%c0_6, %c0_7] : memref<32x1xf32, #tpu.memory_space<vmem>>, vector<32x1xf32>
    %9 = vector.broadcast %8 : vector<32x1xf32> to vector<32x128xf32>
    %10 = arith.mulf %7, %9 : vector<32x128xf32>
    %cst_8 = arith.constant dense<0.000000e+00> : vector<128xf32>
    %11 = vector.multi_reduction <add>, %10, %cst_8 [0] : vector<32x128xf32> to vector<128xf32>
    %12 = vector.shape_cast %11 : vector<128xf32> to vector<1x128xf32>
    %c0_9 = arith.constant 0 : index
    %13 = memref.load %arg5[%c0_9] : memref<1xf32, #tpu.memory_space<smem>>
    %14 = vector.broadcast %13 : f32 to vector<1x128xf32>
    %15 = arith.addf %12, %14 : vector<1x128xf32>
    %16 = arith.negf %15 : vector<1x128xf32>
    %17 = math.exp %16 : vector<1x128xf32>
    %cst_10 = arith.constant 1.000000e+00 : f32
    %18 = vector.broadcast %cst_10 : f32 to vector<1x128xf32>
    %19 = arith.addf %18, %17 : vector<1x128xf32>
    %20 = arith.divf %18, %19 : vector<1x128xf32>
    %c0_11 = arith.constant 0 : index
    %c0_12 = arith.constant 0 : index
    %21 = vector.load %arg6[%c0_11, %c0_12] : memref<1x128xf32, #tpu.memory_space<vmem>>, vector<1x128xf32>
    tpu.vector_store %arg6[%c0_11, %c0_12], %20 {strides = array<i32>} : memref<1x128xf32, #tpu.memory_space<vmem>>, vector<1x128xf32>,
    return
  }
  func.func @transform_0(%arg0: i32) -> (i32, i32) {
    %c0_i32 = arith.constant 0 : i32
    %c0_i32_0 = arith.constant 0 : i32
    return %c0_i32, %arg0 : i32, i32
  }
  func.func @transform_1(%arg0: i32) -> (i32, i32) {
    %c0_i32 = arith.constant 0 : i32
    %c0_i32_0 = arith.constant 0 : i32
    %c0_i32_1 = arith.constant 0 : i32
    return %c0_i32, %c0_i32_0 : i32, i32
  }
  func.func @transform_2(%arg0: i32) -> (i32, i32) {
    %c0_i32 = arith.constant 0 : i32
    %c0_i32_0 = arith.constant 0 : i32
    %c0_i32_1 = arith.constant 0 : i32
    return %c0_i32, %c0_i32_0 : i32, i32
  }
  func.func @transform_3(%arg0: i32) -> (i32, i32) {
    %c0_i32 = arith.constant 0 : i32
    %c0_i32_0 = arith.constant 0 : i32
    %c0_i32_1 = arith.constant 0 : i32
    return %c0_i32, %c0_i32_0 : i32, i32
  }
  func.func @transform_4(%arg0: i32) -> i32 {
    %c0_i32 = arith.constant 0 : i32
    %c0_i32_0 = arith.constant 0 : i32
    return %c0_i32 : i32
  }
  func.func @transform_5(%arg0: i32) -> (i32, i32) {
    %c0_i32 = arith.constant 0 : i32
    %c0_i32_0 = arith.constant 0 : i32
    return %c0_i32, %arg0 : i32, i32
  }
}

</mosaic_0001>

<llo_original>
// kernel: tpu_custom_call.1
$region0: #{tpu_custom_call.1}
  #allocation0 [shape = 'u32[]', space=smem, size = 0x4, offset = 0x4, fixed_abs, tag = 'smem constant byte address 0x4 - core index']
  #allocation1 [shape = 'u32[144,128]{1,0:T(1,128)}', space=vmem, size = 0x12000, scoped, tag = 'internal scratch']
  #allocation2 [shape = 'f32[1]{0:T(128)S(6)}', space=smem, size = 0x200, scoped, tag = 'scoped memory for tpu_custom_call.1']
  %s0 = inlined_call_operand.vmem [shape: f32[16,128], index: 0, kind: input, shape index: {}]
  %s1 = inlined_call_operand.vmem [shape: f32[32,16], index: 1, kind: input, shape index: {}]
  %s2 = inlined_call_operand.vmem [shape: f32[32,1], index: 2, kind: input, shape index: {}]
  %s3 = inlined_call_operand.vmem [shape: f32[32,1], index: 3, kind: input, shape index: {}]
  %s4 = inlined_call_operand.<no memory space> [shape: f32[1], index: 4, kind: input, shape index: {}]
  %s5 = inlined_call_operand.hbm [shape: f32[1,128], index: 5, kind: output, shape index: {}]
  %s6 = sld [smem:[#allocation0]]
  $region30: #{tpu_custom_call.1} parent=0
    _
  %s8 = ssub.s32 1, %s6
  %s9 = scalar_select 0, %s8, %s6
  %10 = sst [smem:[#allocation2]] %s4
  $region1: #{tpu_custom_call.1} parent=0
    #allocation3 [shape = 'u8[512]{0}', space=vmem, size = 0x400, scoped, tag = 'output window, operand 0, single buffered']
    #allocation4 [shape = 's32[1]{0}', space=sflag, size = 0x4, scoped, tag = 'scoped memory for tpu_custom_call.1']
    %11 = vsyncpa [#allocation4], 0
    // Predicated region
    $region2: #{tpu_custom_call.1} parent=1 // pred_check
      _
    $region3: #{tpu_custom_call.1} parent=1 // pred_check_branch
      %13 = sbr.rel (0) target = $region5
    $region4: #{tpu_custom_call.1} parent=1 // pred_region
      _
    $region5: #{tpu_custom_call.1} parent=1 // pred_fallthru
      _
    // Predicated region
    $region6: #{tpu_custom_call.1} parent=1 // pred_check
      _
    $region7: #{tpu_custom_call.1} parent=1 // pred_check_branch
      %15 = sbr.rel (0) target = $region9
    $region8: #{tpu_custom_call.1} parent=1 // pred_region
      _
    $region9: #{tpu_custom_call.1} parent=1 // pred_fallthru
      _
    // Predicated region
    $region10: #{tpu_custom_call.1} parent=1 // pred_check
      _
    $region11: #{tpu_custom_call.1} parent=1 // pred_check_branch
      %17 = sbr.rel (0) target = $region13
    $region12: #{tpu_custom_call.1} parent=1 // pred_region
      _
    $region13: #{tpu_custom_call.1} parent=1 // pred_fallthru
      _
    // Predicated region
    $region14: #{tpu_custom_call.1} parent=1 // pred_check
      _
    $region15: #{tpu_custom_call.1} parent=1 // pred_check_branch
      %19 = sbr.rel (0) target = $region17
    $region16: #{tpu_custom_call.1} parent=1 // pred_region
      _
    $region17: #{tpu_custom_call.1} parent=1 // pred_fallthru
      _
    // Predicated region
    $region18: #{tpu_custom_call.1} parent=1 // pred_check
      _
    $region19: #{tpu_custom_call.1} parent=1 // pred_check_branch
      %21 = sbr.rel (0) target = $region21
    $region20: #{tpu_custom_call.1} parent=1 // pred_region
      _
    $region21: #{tpu_custom_call.1} parent=1 // pred_fallthru
      _
    %v22 = vld [vmem:[%s1] sm:$0xff]
    %v23 = vld [vmem:[%s1 + $0x8] sm:$0xff]
    %v24 = vld [vmem:[%s1 + $0x10] sm:$0xff]
    %v25 = vld [vmem:[%s1 + $0x18] sm:$0xff]
    %v26 = vld [vmem:[%s0] sm:$0xff]
    %v27 = vld [vmem:[%s0 + $0x8] sm:$0xff]
    %v28 = vld [vmem:[%s2] sm:$0xff]
    %v29 = vld [vmem:[%s2 + $0x8] sm:$0xff]
    %v30 = vld [vmem:[%s2 + $0x10] sm:$0xff]
    %v31 = vld [vmem:[%s2 + $0x18] sm:$0xff]
    %33 = vset.pattern.permute.xlu0 0
    %34 = vperm.xlu0 %33, %v28
    %v35 = vpop.permute.xlu0 %34
    %38 = vset.pattern.permute.xlu0 0
    %39 = vperm.xlu0 %38, %v29
    %v40 = vpop.permute.xlu0 %39
    %43 = vset.pattern.permute.xlu0 0
    %44 = vperm.xlu0 %43, %v30
    %v45 = vpop.permute.xlu0 %44
    %48 = vset.pattern.permute.xlu0 0
    %49 = vperm.xlu0 %48, %v31
    %v50 = vpop.permute.xlu0 %49
    %vm52 = vcmask 130048
    %v54 = vsel %vm52, %v22, 0
    %v57 = vsel %vm52, %v23, 0
    %v60 = vsel %vm52, %v24, 0
    %v63 = vsel %vm52, %v25, 0
    %65 = vmatprep.subr.mxu0 0.0
    %66 = vmatpush1.msra.mxu0 %v26
    %67 = vmatprep.subr.mxu0 0.0
    %68 = vmatpush1.msra.mxu0 %v27
    %69 = vmatprep.subr.mxu0 0.0
    %70 = vmatpush1.msra.mxu0 0.0
    %71 = vmatprep.subr.mxu0 0.0
    %72 = vmatpush1.msra.mxu0 0.0
    %73 = vmatprep.subr.mxu0 0.0
    %74 = vmatpush1.msra.mxu0 0.0
    %75 = vmatprep.subr.mxu0 0.0
    %76 = vmatpush1.msra.mxu0 0.0
    %77 = vmatprep.subr.mxu0 0.0
    %78 = vmatpush1.msra.mxu0 0.0
    %79 = vmatprep.subr.mxu0 0.0
    %80 = vmatpush1.msra.mxu0 0.0
    %81 = vmatprep.subr.mxu0 0.0
    %82 = vmatpush1.msra.mxu0 0.0
    %83 = vmatprep.subr.mxu0 0.0
    %84 = vmatpush1.msra.mxu0 0.0
    %85 = vmatprep.subr.mxu0 0.0
    %86 = vmatpush1.msra.mxu0 0.0
    %87 = vmatprep.subr.mxu0 0.0
    %88 = vmatpush1.msra.mxu0 0.0
    %89 = vmatprep.subr.mxu0 0.0
    %90 = vmatpush1.msra.mxu0 0.0
    %91 = vmatprep.subr.mxu0 0.0
    %92 = vmatpush1.msra.mxu0 0.0
    %93 = vmatprep.subr.mxu0 0.0
    %94 = vmatpush1.msra.mxu0 0.0
    %95 = vmatprep.subr.mxu0 0.0
    %96 = vmatpush1.msra.mxu0 0.0
    %97 = vmatprep.subr.mxu0 0.0
    %98 = vmatpush1.msra.mxu0 0.0
    %99 = vmatprep.subr.mxu0 0.0
    %100 = vmatpush1.msra.mxu0 0.0
    %101 = vmatprep.subr.mxu0 0.0
    %102 = vmatpush1.msra.mxu0 0.0
    %103 = vmatprep.subr.mxu0 0.0
    %104 = vmatpush1.msra.mxu0 0.0
    %105 = vmatprep.subr.mxu0 0.0
    %106 = vmatpush1.msra.mxu0 0.0
    %107 = vmatprep.subr.mxu0 0.0
    %108 = vmatpush1.msra.mxu0 0.0
    %109 = vmatprep.subr.mxu0 0.0
    %110 = vmatpush1.msra.mxu0 0.0
    %111 = vmatprep.subr.mxu0 0.0
    %112 = vmatpush1.msra.mxu0 0.0
    %113 = vmatprep.subr.mxu0 0.0
    %114 = vmatpush1.msra.mxu0 0.0
    %115 = vmatprep.subr.mxu0 0.0
    %116 = vmatpush1.msra.mxu0 0.0
    %117 = vmatprep.subr.mxu0 0.0
    %118 = vmatpush1.msra.mxu0 0.0
    %119 = vmatprep.subr.mxu0 0.0
    %120 = vmatpush1.msra.mxu0 0.0
    %121 = vmatprep.subr.mxu0 0.0
    %122 = vmatpush1.msra.mxu0 0.0
    %123 = vmatprep.subr.mxu0 0.0
    %124 = vmatpush1.msra.mxu0 0.0
    %125 = vmatprep.subr.mxu0 0.0
    %126 = vmatpush1.msra.mxu0 0.0
    %127 = vmatprep.subr.mxu0 0.0
    %128 = vmatpush1.msra.mxu0 0.0
    %129 = vmatprep.mubr.f32.mxu0 0.0
    %130 = vmatmul.mubr.f32.gmra.mrb[0].mxu0 %v54
    %v131 = vpop.f32.mrb[0].mxu0
    %v132 = vadd.f32 %v35, %v131
    %v133 = vpop.f32.mrb[0].mxu0
    %134 = vmatprep.mubr.f32.mxu0 0.0
    %135 = vmatmul.mubr.f32.gmra.mrb[0].mxu0 %v57
    %v136 = vpop.f32.mrb[0].mxu0
    %v137 = vadd.f32 %v40, %v136
    %v138 = vpop.f32.mrb[0].mxu0
    %139 = vmatprep.mubr.f32.mxu0 0.0
    %140 = vmatmul.mubr.f32.gmra.mrb[0].mxu0 %v60
    %v141 = vpop.f32.mrb[0].mxu0
    %v142 = vadd.f32 %v45, %v141
    %v143 = vpop.f32.mrb[0].mxu0
    %144 = vmatprep.mubr.f32.mxu0 0.0
    %145 = vmatmul.mubr.f32.gmra.mrb[0].mxu0 %v63
    %v146 = vpop.f32.mrb[0].mxu0
    %v147 = vadd.f32 %v50, %v146
    %v148 = vpop.f32.mrb[0].mxu0
    %149 = vdwg.mxu0
    %v150 = vmax.f32 %v132, 0.0
    %v151 = vmax.f32 %v137, 0.0
    %v152 = vmax.f32 %v142, 0.0
    %v153 = vmax.f32 %v147, 0.0
    %v154 = vld [vmem:[%s3] sm:$0xff]
    %v155 = vld [vmem:[%s3 + $0x8] sm:$0xff]
    %v156 = vld [vmem:[%s3 + $0x10] sm:$0xff]
    %v157 = vld [vmem:[%s3 + $0x18] sm:$0xff]
    %159 = vset.pattern.permute.xlu0 0
    %160 = vperm.xlu0 %159, %v154
    %v161 = vpop.permute.xlu0 %160
    %164 = vset.pattern.permute.xlu0 0
    %165 = vperm.xlu0 %164, %v155
    %v166 = vpop.permute.xlu0 %165
    %169 = vset.pattern.permute.xlu0 0
    %170 = vperm.xlu0 %169, %v156
    %v171 = vpop.permute.xlu0 %170
    %174 = vset.pattern.permute.xlu0 0
    %175 = vperm.xlu0 %174, %v157
    %v176 = vpop.permute.xlu0 %175
    %v178 = vmul.f32 %v150, %v161
    %v179 = vmul.f32 %v151, %v166
    %v180 = vmul.f32 %v152, %v171
    %v181 = vmul.f32 %v153, %v176
    %v182 = vadd.f32 %v178, %v179
    %v183 = vadd.f32 %v182, %v180
    %v184 = vadd.f32 %v183, %v181
    %v185 = vrot.slane %v184, 4
    %v186 = vadd.f32 %v184, %v185
    %v187 = vrot.slane %v186, 2
    %v188 = vadd.f32 %v186, %v187
    %v189 = vrot.slane %v188, 1
    %v190 = vadd.f32 %v188, %v189
    %s191 = sld [smem:[#allocation2]]
    %v192 = vstv %s191
    %v193 = vadd.f32 %v190, %v192
    %v194 = vxor.u32 %v193, 2147483648
    %v195 = vmul.f32 %v194, 1.442695
    %v196 = vpow.pop %v195
    %v197 = vadd.f32 %v196, 1.0
    %v198 = vrcp.pop %v197
    %v199 = vmul.f32 1.0, %v198
    %200 = vst [vmem:[#allocation3] sm:$0x1] %v199
    // Predicated region
    $region22: #{tpu_custom_call.1} parent=1 // pred_check
      _
    $region23: #{tpu_custom_call.1} parent=1 // pred_check_branch
      %202 = sbr.rel (0) target = $region25
    $region24: #{tpu_custom_call.1} parent=1 // pred_region
      %s204 = ssub.s32 16, 16
      %205 = vsyncadd [#allocation4], %s204
      %s207 = sshll.u32 [#allocation3], 4
      %s208 = int_to_ptr.vmem [resolvable:$true] %s207
      %210 = dma.vmem_to_hbm [thread:$0]  %s208, 16, %s5, [#allocation4]
    $region25: #{tpu_custom_call.1} parent=1 // pred_fallthru
      _
    // Predicated region
    $region26: #{tpu_custom_call.1} parent=1 // pred_check
      _
    $region27: #{tpu_custom_call.1} parent=1 // pred_check_branch
      %212 = sbr.rel (0) target = $region29
    $region28: #{tpu_custom_call.1} parent=1 // pred_region
      %213 = dma.done [#allocation4], 16
    $region29: #{tpu_custom_call.1} parent=1 // pred_fallthru
      _
    %214 = vsyncpa [#allocation4], 1

</llo_original>
